<compile_context>
chip_gen: v6e
topology: v6e:2x2x1
jax: 0.10.0
libtpu: 0.0.40
codegen_flags: <defaults>
</compile_context>

<pallas_src>
import functools

import jax
import jax.numpy as jnp
from jax import lax
from jax.experimental import pallas as pl
from jax.experimental.pallas import tpu as pltpu


# MXU operand precision for the GCN / decoder matmuls.  float32 matches the
# PyTorch reference; set to jnp.bfloat16 on v6e/v7x when N/E/C reach
# MXU-relevant sizes (accumulation stays float32 either way; gate math,
# activations and the evolved weight are always float32).
MXU_DTYPE = jnp.float32

_VMEM = pltpu.MemorySpace.VMEM
_SMEM = pltpu.MemorySpace.SMEM


# ----------------------------------------------------------------------------
# Fused Pallas kernel
# ----------------------------------------------------------------------------
def evolve_fused_kernel(x_tilde_ref, h0_ref, wih_ref, whh_ref, bi_ref, bh_ref,
                        adj_ref, x_ref, eidx_ref,
                        w1s_ref, w1d_ref, b1_ref, w2_ref, b2_ref,
                        o_ref, nodeemb_ref, gath_ref, *, mxu_dtype):
    """Fused EvolveGCN-H step + EdgeDecoder (single invocation, no grid).

      GRU    : evolve the GCN weight with 2 fused (C,3C) GEMMs
      GCN    : node_emb = A_norm @ (X @ W_evolved)
      gather : edge endpoints via dynamic row loads from a VMEM scratch,
               indices streamed on the scalar path (SMEM)
      MLP    : relu(emb_s @ W1s + emb_d @ W1d + b1); lin2 as (1,C)x(E,C)^T
               -> lane-dense (1, E) prediction row
    """
    C = h0_ref.shape[0]
    E2 = gath_ref.shape[0]          # 2 * num_pred_edges
    E = E2 // 2

    # ---- GRU cell (single step, batch = C rows); all f32 on VPU/EUP ---------
    x_t = x_tilde_ref[...]
    h0 = h0_ref[...]
    gi = jnp.dot(x_t, wih_ref[...], preferred_element_type=jnp.float32) + bi_ref[...]
    gh = jnp.dot(h0, whh_ref[...], preferred_element_type=jnp.float32) + bh_ref[...]
    r = jax.nn.sigmoid(gi[:, 0:C] + gh[:, 0:C])
    z = jax.nn.sigmoid(gi[:, C:2 * C] + gh[:, C:2 * C])
    n = jnp.tanh(gi[:, 2 * C:3 * C] + r * gh[:, 2 * C:3 * C])
    w_ev = (1.0 - z) * n + z * h0                                      # (C, C)

    # ---- GCNConv with evolved weight: A_norm @ (X @ W) -----------------------
    xw = jnp.dot(x_ref[...].astype(mxu_dtype), w_ev.astype(mxu_dtype),
                 preferred_element_type=jnp.float32)                   # (N, C)
    node_emb = jnp.dot(adj_ref[...].astype(mxu_dtype), xw.astype(mxu_dtype),
                       preferred_element_type=jnp.float32)             # (N, C)
    nodeemb_ref[...] = node_emb

    # ---- endpoint gather: dynamic row loads, indices from SMEM ---------------
    # rows [0, E) = source endpoints, rows [E, 2E) = destination endpoints
    def gather_body(e, carry):
        idx = eidx_ref[e]
        gath_ref[pl.ds(e, 1), :] = nodeemb_ref[pl.ds(idx, 1), :]
        return carry

    lax.fori_loop(0, E2, gather_body, 0)

    emb = gath_ref[...]                                                # (2E, C)
    emb_s = emb[:E]
    emb_d = emb[E:]

    # ---- EdgeDecoder MLP ------------------------------------------------------
    h = jnp.dot(emb_s.astype(mxu_dtype), w1s_ref[...].astype(mxu_dtype),
                preferred_element_type=jnp.float32)
    h = h + jnp.dot(emb_d.astype(mxu_dtype), w1d_ref[...].astype(mxu_dtype),
                    preferred_element_type=jnp.float32)
    h = jnp.maximum(h + b1_ref[...], 0.0)                              # (E, C)
    # lin2: (1,C) contracted against (E,C) -> lane-dense (1, E) row.
    o_ref[...] = (lax.dot_general(w2_ref[...].astype(mxu_dtype), h.astype(mxu_dtype),
                                  dimension_numbers=(((1,), (1,)), ((), ())),
                                  preferred_element_type=jnp.float32)
                  + b2_ref[...])


def _fused_pallas_call(N, C, E):
    in_specs = (
        [pl.BlockSpec(memory_space=_VMEM)] * 8          # x_tilde..b_h, adj, x
        + [pl.BlockSpec(memory_space=_SMEM)]            # eidx (scalar path)
        + [pl.BlockSpec(memory_space=_VMEM)] * 5        # decoder weights/biases
    )
    return pl.pallas_call(
        functools.partial(evolve_fused_kernel, mxu_dtype=MXU_DTYPE),
        in_specs=in_specs,
        out_specs=pl.BlockSpec(memory_space=_VMEM),
        out_shape=jax.ShapeDtypeStruct((1, E), jnp.float32),
        scratch_shapes=[pltpu.VMEM((N, C), jnp.float32),       # node_emb
                        pltpu.VMEM((2 * E, C), jnp.float32)],  # gathered endpoints
        compiler_params=pltpu.CompilerParams(
            # Explicit scoped-VMEM budget (defaults: 16 MiB v5e / 32 MiB v6e,v7x).
            # Plenty at these sizes; revisit together with the SpMM TODO before
            # growing N (dense adj is the dominant VMEM consumer).
            vmem_limit_bytes=32 * 1024 * 1024),
    )


# ----------------------------------------------------------------------------
# Parameters (deterministic, synthetic; torch layout -> kernel layout once)
# ----------------------------------------------------------------------------
def init_params(key, in_channels, hidden_size):
    """Synthetic parameters in PyTorch layout (GRU [r|z|n] row blocks, etc.)."""
    C, H = in_channels, hidden_size
    ks = jax.random.split(key, 10)
    s_c = 1.0 / jnp.sqrt(jnp.float32(C))
    s_2h = 1.0 / jnp.sqrt(jnp.float32(2 * H))
    s_h = 1.0 / jnp.sqrt(jnp.float32(H))
    return dict(
        pool_w=jax.random.normal(ks[0], (C,), jnp.float32) * s_c,          # TopKPooling attn
        gru_w_ih=jax.random.normal(ks[1], (3 * C, C), jnp.float32) * s_c,  # [r|z|n]
        gru_w_hh=jax.random.normal(ks[2], (3 * C, C), jnp.float32) * s_c,
        gru_b_ih=jax.random.normal(ks[3], (3 * C,), jnp.float32) * s_c,
        gru_b_hh=jax.random.normal(ks[4], (3 * C,), jnp.float32) * s_c,
        gcn_w_init=jax.random.normal(ks[5], (C, C), jnp.float32) * s_c,    # EvolveGCNH weight
        dec_w1=jax.random.normal(ks[6], (H, 2 * H), jnp.float32) * s_2h,   # Linear(2H, H)
        dec_b1=jax.random.normal(ks[7], (H,), jnp.float32) * s_2h,
        dec_w2=jax.random.normal(ks[8], (1, H), jnp.float32) * s_h,        # Linear(H, 1)
        dec_b2=jax.random.normal(ks[9], (1,), jnp.float32) * s_h,
    )


def prepare_params(p):
    """One-time conversion to kernel-ready layouts (runs outside the jitted fwd)."""
    C = p["gcn_w_init"].shape[0]
    H = p["dec_w1"].shape[0]
    pw = p["pool_w"]
    p_hat = pw / jnp.maximum(jnp.sqrt(jnp.sum(pw * pw)), 1e-12)
    return dict(
        pool_p=p_hat,                               # (C,) normalized pooling vector
        w_ih=p["gru_w_ih"].T,                       # (C, 3C), columns in [r|z|n] order
        w_hh=p["gru_w_hh"].T,                       # (C, 3C)
        b_i=p["gru_b_ih"].reshape(1, 3 * C),
        b_h=p["gru_b_hh"].reshape(1, 3 * C),
        h0=p["gcn_w_init"],                         # (C, C) GRU hidden = GCN weight
        w1_s=p["dec_w1"][:, :H].T,                  # (H, H)  src half of lin1
        w1_d=p["dec_w1"][:, H:].T,                  # (H, H)  dst half of lin1
        b1=p["dec_b1"].reshape(1, H),
        w2_row=p["dec_w2"].reshape(1, H),           # lin2 weight as a row
        b2=p["dec_b2"].reshape(1, 1),
    )


# ----------------------------------------------------------------------------
# ModelEVOLVE forward
# ----------------------------------------------------------------------------
def model_evolve_forward(params, x, edge_index, edge_weights_index):
    N, C = x.shape
    E = edge_weights_index.shape[1]
    assert N >= C, "EvolveGCN-H summarization selects k = in_channels nodes; need N >= C"

    # ---- Encoder: Dropout -> EvolveGCNH ----
    # TODO(synk): training-mode dropout (random mask + 1/(1-p) scale) omitted;
    # eval/inference semantics (identity) are used here.

    # (1) TopKPooling summary in plain XLA (tiny matvec + top-k; a dedicated
    #     pallas_call here was pure launch/DMA overhead, and there is no Pallas sort).
    score = jnp.tanh(x @ params["pool_p"])                   # (N,)
    top_vals, perm = lax.top_k(score, C)
    x_tilde = x[perm] * top_vals[:, None]                    # (C, C)

    # (2) Dense symmetric-normalized adjacency (add_self_loops=False).
    # TODO(synk): for large N replace this dense (N,N) scatter + VMEM-resident adj
    # with a row-tiled / CSR SpMM kernel (scalar-prefetch segment sums) on a
    # "parallel" grid axis; mandatory first on v7x (64 MiB VMEM, 2 TCs).
    src, dst = edge_index[0], edge_index[1]
    ew = jnp.ones(src.shape[0], jnp.float32)
    deg = jnp.zeros((N,), jnp.float32).at[dst].add(ew)
    dinv = jnp.where(deg > 0, lax.rsqrt(jnp.maximum(deg, 1e-12)), 0.0)
    norm = dinv[src] * ew * dinv[dst]
    adj = jnp.zeros((N, N), jnp.float32).at[dst, src].add(norm)

    # (3) Edge endpoint indices -> flattened 1-D int32 on the scalar path
    #     (first E entries = src, next E = dst).  Clamp guards against unchecked
    #     out-of-range dynamic VMEM reads inside the kernel.
    eidx_flat = jnp.clip(edge_weights_index.reshape(-1), 0, N - 1).astype(jnp.int32)

    # (4) Single fused kernel: GRU weight evolution + GCN + gather + decoder MLP.
    out_row = _fused_pallas_call(N, C, E)(
        x_tilde, params["h0"], params["w_ih"], params["w_hh"],
        params["b_i"], params["b_h"], adj, x, eidx_flat,
        params["w1_s"], params["w1_d"], params["b1"],
        params["w2_row"], params["b2"])
    # TODO(synk): when E grows, pad E up to a multiple of 128 here (and slice back)
    # so the (1,E) output store is lane-dense / unmasked.
    return out_row[0]                                        # .view(-1)


# ----------------------------------------------------------------------------
if __name__ == "__main__":
    num_nodes = 16
    in_channels = 8      # hidden_size must equal in_channels for ModelEVOLVE
    hidden_size = 8
    num_edges = 32       # graph edges fed to the encoder
    num_pred_edges = 16  # edges whose weights the decoder predicts

    key = jax.random.PRNGKey(0)
    k_x, k_e, k_w, k_p = jax.random.split(key, 4)
    x = jax.random.normal(k_x, (num_nodes, in_channels), jnp.float32)
    edge_index = jax.random.randint(k_e, (2, num_edges), 0, num_nodes, jnp.int32)
    edge_weights_index = jax.random.randint(k_w, (2, num_pred_edges), 0, num_nodes, jnp.int32)

    torch_params = init_params(k_p, in_channels, hidden_size)
    params = prepare_params(torch_params)   # one-time layout prep, outside jit

    fwd = jax.jit(model_evolve_forward)
    edge_weights_pred = fwd(params, x, edge_index, edge_weights_index)
    jax.block_until_ready(edge_weights_pred)

    assert edge_weights_pred.shape == (num_pred_edges,)
    assert edge_weights_pred.dtype == jnp.float32
    assert bool(jnp.all(jnp.isfinite(edge_weights_pred)))
    print("KERNEL_OK")
</pallas_src>

<mosaic_0001>
module attributes {stable_mosaic.version = 11 : i64} {
  func.func private @main(%arg0: i32) attributes {dimension_semantics = [#tpu.dimension_semantics<core_parallel>], iteration_bounds = array<i64: 2>, tpu.core_type = #tpu.core_type<sc_scalar_subcore>, window_params = []} {
    return
  }
}

module attributes {stable_mosaic.version = 11 : i64} {
  func.func private @main(%arg0: i32) attributes {dimension_semantics = [#tpu.dimension_semantics<core_parallel>], iteration_bounds = array<i64: 2>, tpu.core_type = #tpu.core_type<sc_scalar_subcore>, window_params = []} {
    return
  }
}

module attributes {stable_mosaic.version = 11 : i64} {
  func.func @evolve_fused_kernel(%arg0: memref<8x8xf32, #tpu.memory_space<vmem>>, %arg1: memref<8x8xf32, #tpu.memory_space<vmem>>, %arg2: memref<8x24xf32, #tpu.memory_space<vmem>>, %arg3: memref<8x24xf32, #tpu.memory_space<vmem>>, %arg4: memref<1x24xf32, #tpu.memory_space<vmem>>, %arg5: memref<1x24xf32, #tpu.memory_space<vmem>>, %arg6: memref<16x16xf32, #tpu.memory_space<vmem>>, %arg7: memref<16x8xf32, #tpu.memory_space<vmem>>, %arg8: memref<32xi32, #tpu.memory_space<smem>>, %arg9: memref<8x8xf32, #tpu.memory_space<vmem>>, %arg10: memref<8x8xf32, #tpu.memory_space<vmem>>, %arg11: memref<1x8xf32, #tpu.memory_space<vmem>>, %arg12: memref<1x8xf32, #tpu.memory_space<vmem>>, %arg13: memref<1x1xf32, #tpu.memory_space<vmem>>, %arg14: memref<1x16xf32, #tpu.memory_space<vmem>>, %arg15: memref<16x8xf32, #tpu.memory_space<vmem>>, %arg16: memref<32x8xf32, #tpu.memory_space<vmem>>) attributes {dimension_semantics = [], scalar_prefetch = 0 : i64, scratch_operands = 2 : i64, tpu.core_type = #tpu.core_type<tc>} {
    %c0 = arith.constant 0 : index
    %c0_0 = arith.constant 0 : index
    %0 = vector.load %arg0[%c0, %c0_0] : memref<8x8xf32, #tpu.memory_space<vmem>>, vector<8x8xf32>
    %c0_1 = arith.constant 0 : index
    %c0_2 = arith.constant 0 : index
    %1 = vector.load %arg1[%c0_1, %c0_2] : memref<8x8xf32, #tpu.memory_space<vmem>>, vector<8x8xf32>
    %c0_3 = arith.constant 0 : index
    %c0_4 = arith.constant 0 : index
    %2 = vector.load %arg2[%c0_3, %c0_4] : memref<8x24xf32, #tpu.memory_space<vmem>>, vector<8x24xf32>
    %cst = arith.constant dense<0.000000e+00> : vector<8x24xf32>
    %3 = tpu.matmul %0, %2, %cst {dimension_numbers = #tpu.dot_dimension_numbers<[1], [0], [0], [1], [0, 0, 1, 1], [], []>} : vector<8x8xf32>, vector<8x24xf32>, vector<8x24xf32> -> vector<8x24xf32>
    %c0_5 = arith.constant 0 : index
    %c0_6 = arith.constant 0 : index
    %4 = vector.load %arg4[%c0_5, %c0_6] : memref<1x24xf32, #tpu.memory_space<vmem>>, vector<1x24xf32>
    %5 = vector.broadcast %4 : vector<1x24xf32> to vector<8x24xf32>
    %6 = arith.addf %3, %5 : vector<8x24xf32>
    %c0_7 = arith.constant 0 : index
    %c0_8 = arith.constant 0 : index
    %7 = vector.load %arg3[%c0_7, %c0_8] : memref<8x24xf32, #tpu.memory_space<vmem>>, vector<8x24xf32>
    %cst_9 = arith.constant dense<0.000000e+00> : vector<8x24xf32>
    %8 = tpu.matmul %1, %7, %cst_9 {dimension_numbers = #tpu.dot_dimension_numbers<[1], [0], [0], [1], [0, 0, 1, 1], [], []>} : vector<8x8xf32>, vector<8x24xf32>, vector<8x24xf32> -> vector<8x24xf32>
    %c0_10 = arith.constant 0 : index
    %c0_11 = arith.constant 0 : index
    %9 = vector.load %arg5[%c0_10, %c0_11] : memref<1x24xf32, #tpu.memory_space<vmem>>, vector<1x24xf32>
    %10 = vector.broadcast %9 : vector<1x24xf32> to vector<8x24xf32>
    %11 = arith.addf %8, %10 : vector<8x24xf32>
    %12 = vector.extract_strided_slice %6 {offsets = [0, 0], sizes = [8, 8], strides = [1, 1]} : vector<8x24xf32> to vector<8x8xf32>
    %13 = vector.extract_strided_slice %11 {offsets = [0, 0], sizes = [8, 8], strides = [1, 1]} : vector<8x24xf32> to vector<8x8xf32>
    %14 = arith.addf %12, %13 : vector<8x8xf32>
    %15 = arith.negf %14 : vector<8x8xf32>
    %16 = math.exp %15 : vector<8x8xf32>
    %cst_12 = arith.constant 1.000000e+00 : f32
    %17 = vector.broadcast %cst_12 : f32 to vector<8x8xf32>
    %18 = arith.addf %17, %16 : vector<8x8xf32>
    %19 = arith.divf %17, %18 : vector<8x8xf32>
    %20 = vector.extract_strided_slice %6 {offsets = [0, 8], sizes = [8, 8], strides = [1, 1]} : vector<8x24xf32> to vector<8x8xf32>
    %21 = vector.extract_strided_slice %11 {offsets = [0, 8], sizes = [8, 8], strides = [1, 1]} : vector<8x24xf32> to vector<8x8xf32>
    %22 = arith.addf %20, %21 : vector<8x8xf32>
    %23 = arith.negf %22 : vector<8x8xf32>
    %24 = math.exp %23 : vector<8x8xf32>
    %cst_13 = arith.constant 1.000000e+00 : f32
    %25 = vector.broadcast %cst_13 : f32 to vector<8x8xf32>
    %26 = arith.addf %25, %24 : vector<8x8xf32>
    %27 = arith.divf %25, %26 : vector<8x8xf32>
    %28 = vector.extract_strided_slice %6 {offsets = [0, 16], sizes = [8, 8], strides = [1, 1]} : vector<8x24xf32> to vector<8x8xf32>
    %29 = vector.extract_strided_slice %11 {offsets = [0, 16], sizes = [8, 8], strides = [1, 1]} : vector<8x24xf32> to vector<8x8xf32>
    %30 = arith.mulf %19, %29 : vector<8x8xf32>
    %31 = arith.addf %28, %30 : vector<8x8xf32>
    %32 = math.tanh %31 : vector<8x8xf32>
    %cst_14 = arith.constant 1.000000e+00 : f32
    %33 = vector.broadcast %cst_14 : f32 to vector<8x8xf32>
    %34 = arith.subf %33, %27 : vector<8x8xf32>
    %35 = arith.mulf %34, %32 : vector<8x8xf32>
    %36 = arith.mulf %27, %1 : vector<8x8xf32>
    %37 = arith.addf %35, %36 : vector<8x8xf32>
    %c0_15 = arith.constant 0 : index
    %c0_16 = arith.constant 0 : index
    %38 = vector.load %arg7[%c0_15, %c0_16] : memref<16x8xf32, #tpu.memory_space<vmem>>, vector<16x8xf32>
    %cst_17 = arith.constant dense<0.000000e+00> : vector<16x8xf32>
    %39 = tpu.matmul %38, %37, %cst_17 {dimension_numbers = #tpu.dot_dimension_numbers<[1], [0], [0], [1], [0, 0, 1, 1], [], []>} : vector<16x8xf32>, vector<8x8xf32>, vector<16x8xf32> -> vector<16x8xf32>
    %c0_18 = arith.constant 0 : index
    %c0_19 = arith.constant 0 : index
    %40 = vector.load %arg6[%c0_18, %c0_19] : memref<16x16xf32, #tpu.memory_space<vmem>>, vector<16x16xf32>
    %cst_20 = arith.constant dense<0.000000e+00> : vector<16x8xf32>
    %41 = tpu.matmul %40, %39, %cst_20 {dimension_numbers = #tpu.dot_dimension_numbers<[1], [0], [0], [1], [0, 0, 1, 1], [], []>} : vector<16x16xf32>, vector<16x8xf32>, vector<16x8xf32> -> vector<16x8xf32>
    %c0_21 = arith.constant 0 : index
    %c0_22 = arith.constant 0 : index
    %42 = vector.load %arg15[%c0_21, %c0_22] : memref<16x8xf32, #tpu.memory_space<vmem>>, vector<16x8xf32>
    tpu.vector_store %arg15[%c0_21, %c0_22], %41 {strides = array<i32>} : memref<16x8xf32, #tpu.memory_space<vmem>>, vector<16x8xf32>,
    %c0_i32 = arith.constant 0 : i32
    %c32_i32 = arith.constant 32 : i32
    %43 = arith.addi %c0_i32, %c32_i32 : i32
    %c1_i32 = arith.constant 1 : i32
    scf.for %arg17 = %c0_i32 to %43 step %c1_i32  : i32 {
      %63 = arith.index_cast %arg17 : i32 to index
      %64 = memref.load %arg8[%63] : memref<32xi32, #tpu.memory_space<smem>>
      %65 = arith.index_cast %64 : i32 to index
      %c0_42 = arith.constant 0 : index
      %66 = vector.load %arg15[%65, %c0_42] : memref<16x8xf32, #tpu.memory_space<vmem>>, vector<1x8xf32>
      %67 = arith.index_cast %arg17 : i32 to index
      %c0_43 = arith.constant 0 : index
      %68 = vector.load %arg16[%67, %c0_43] : memref<32x8xf32, #tpu.memory_space<vmem>>, vector<1x8xf32>
      tpu.vector_store %arg16[%67, %c0_43], %66 {strides = array<i32>} : memref<32x8xf32, #tpu.memory_space<vmem>>, vector<1x8xf32>,
    }
    %c32_i32_23 = arith.constant 32 : i32
    %c0_24 = arith.constant 0 : index
    %c0_25 = arith.constant 0 : index
    %44 = vector.load %arg16[%c0_24, %c0_25] : memref<32x8xf32, #tpu.memory_space<vmem>>, vector<32x8xf32>
    %45 = vector.extract_strided_slice %44 {offsets = [0, 0], sizes = [16, 8], strides = [1, 1]} : vector<32x8xf32> to vector<16x8xf32>
    %46 = vector.extract_strided_slice %44 {offsets = [16, 0], sizes = [16, 8], strides = [1, 1]} : vector<32x8xf32> to vector<16x8xf32>
    %c0_26 = arith.constant 0 : index
    %c0_27 = arith.constant 0 : index
    %47 = vector.load %arg9[%c0_26, %c0_27] : memref<8x8xf32, #tpu.memory_space<vmem>>, vector<8x8xf32>
    %cst_28 = arith.constant dense<0.000000e+00> : vector<16x8xf32>
    %48 = tpu.matmul %45, %47, %cst_28 {dimension_numbers = #tpu.dot_dimension_numbers<[1], [0], [0], [1], [0, 0, 1, 1], [], []>} : vector<16x8xf32>, vector<8x8xf32>, vector<16x8xf32> -> vector<16x8xf32>
    %c0_29 = arith.constant 0 : index
    %c0_30 = arith.constant 0 : index
    %49 = vector.load %arg10[%c0_29, %c0_30] : memref<8x8xf32, #tpu.memory_space<vmem>>, vector<8x8xf32>
    %cst_31 = arith.constant dense<0.000000e+00> : vector<16x8xf32>
    %50 = tpu.matmul %46, %49, %cst_31 {dimension_numbers = #tpu.dot_dimension_numbers<[1], [0], [0], [1], [0, 0, 1, 1], [], []>} : vector<16x8xf32>, vector<8x8xf32>, vector<16x8xf32> -> vector<16x8xf32>
    %51 = arith.addf %48, %50 : vector<16x8xf32>
    %c0_32 = arith.constant 0 : index
    %c0_33 = arith.constant 0 : index
    %52 = vector.load %arg11[%c0_32, %c0_33] : memref<1x8xf32, #tpu.memory_space<vmem>>, vector<1x8xf32>
    %53 = vector.broadcast %52 : vector<1x8xf32> to vector<16x8xf32>
    %54 = arith.addf %51, %53 : vector<16x8xf32>
    %cst_34 = arith.constant 0.000000e+00 : f32
    %55 = vector.broadcast %cst_34 : f32 to vector<16x8xf32>
    %56 = arith.maximumf %54, %55 : vector<16x8xf32>
    %c0_35 = arith.constant 0 : index
    %c0_36 = arith.constant 0 : index
    %57 = vector.load %arg12[%c0_35, %c0_36] : memref<1x8xf32, #tpu.memory_space<vmem>>, vector<1x8xf32>
    %cst_37 = arith.constant dense<0.000000e+00> : vector<1x16xf32>
    %58 = tpu.matmul %57, %56, %cst_37 {dimension_numbers = #tpu.dot_dimension_numbers<[1], [1], [0], [0], [0, 0, 1, 0], [], []>} : vector<1x8xf32>, vector<16x8xf32>, vector<1x16xf32> -> vector<1x16xf32>
    %c0_38 = arith.constant 0 : index
    %c0_39 = arith.constant 0 : index
    %59 = vector.load %arg13[%c0_38, %c0_39] : memref<1x1xf32, #tpu.memory_space<vmem>>, vector<1x1xf32>
    %60 = vector.broadcast %59 : vector<1x1xf32> to vector<1x16xf32>
    %61 = arith.addf %58, %60 : vector<1x16xf32>
    %c0_40 = arith.constant 0 : index
    %c0_41 = arith.constant 0 : index
    %62 = vector.load %arg14[%c0_40, %c0_41] : memref<1x16xf32, #tpu.memory_space<vmem>>, vector<1x16xf32>
    tpu.vector_store %arg14[%c0_40, %c0_41], %61 {strides = array<i32>} : memref<1x16xf32, #tpu.memory_space<vmem>>, vector<1x16xf32>,
    return
  }
}

</mosaic_0001>

<llo_original>
// kernel: mul.9
$region0: #{mul.9}
  #allocation0 [shape = 's32[1]{0}', space=sflag, size = 0x4, scoped, tag = 'scoped memory for mul.9']
  %s0 = inlined_call_operand.vmem [shape: f32[32], index: 0, kind: input, shape index: {}]
  %s1 = inlined_call_operand.vmem [shape: f32[32], index: 1, kind: input, shape index: {}]
  %s2 = inlined_call_operand.vmem [shape: f32[32], index: 2, kind: output, shape index: {}]
  %v3 = vld [vmem:[%s0] sm:$0x1]
  %v4 = vld [vmem:[%s1] sm:$0x1]
  %5 = xla_tuple %v3, %v4
  %6 = xla_tuple %5
  %v7 = vmul.f32 %v3, %v4
  %8 = xla_tuple %v7
  %9 = vst [vmem:[%s2] sm:$0x1] %v7

// kernel: model_evolve_forward.1
$region0: #{model_evolve_forward.1}
  #allocation0 [shape = 'u32[]', space=smem, size = 0x4, offset = 0x4, fixed_abs, tag = 'smem constant byte address 0x4 - core index']
  #allocation1 [shape = 'u32[144,128]{1,0:T(1,128)}', space=vmem, size = 0x12000, scoped, tag = 'internal scratch']
  #allocation2 [shape = 'f32[16,8]{1,0:T(8,128)}', space=vmem, size = 0x2000, scoped, tag = 'scratch operand']
  #allocation3 [shape = 'f32[32,8]{1,0:T(8,128)}', space=vmem, size = 0x4000, scoped, tag = 'scratch operand']
  #allocation4 [shape = 'f32[1,1]{1,0:T(1,128)S(1)}', space=vmem, size = 0x200, scoped, tag = 'scoped memory for model_evolve_forward.1']
  %s0 = inlined_call_operand.vmem [shape: f32[8,8], index: 0, kind: input, shape index: {}]
  %s1 = inlined_call_operand.vmem [shape: f32[8,8], index: 1, kind: input, shape index: {}]
  %s2 = inlined_call_operand.vmem [shape: f32[8,24], index: 2, kind: input, shape index: {}]
  %s3 = inlined_call_operand.vmem [shape: f32[8,24], index: 3, kind: input, shape index: {}]
  %s4 = inlined_call_operand.vmem [shape: f32[1,24], index: 4, kind: input, shape index: {}]
  %s5 = inlined_call_operand.vmem [shape: f32[1,24], index: 5, kind: input, shape index: {}]
  %s6 = inlined_call_operand.hbm [shape: f32[16,16], index: 6, kind: input, shape index: {}]
  %s7 = inlined_call_operand.vmem [shape: f32[16,8], index: 7, kind: input, shape index: {}]
  %s8 = inlined_call_operand.vmem [shape: s32[32], index: 8, kind: input, shape index: {}]
  %s9 = inlined_call_operand.vmem [shape: f32[8,8], index: 9, kind: input, shape index: {}]
  %s10 = inlined_call_operand.vmem [shape: f32[8,8], index: 10, kind: input, shape index: {}]
  %s11 = inlined_call_operand.vmem [shape: f32[1,8], index: 11, kind: input, shape index: {}]
  %s12 = inlined_call_operand.vmem [shape: f32[1,8], index: 12, kind: input, shape index: {}]
  %s13 = inlined_call_operand.<no memory space> [shape: f32[1,1], index: 13, kind: input, shape index: {}]
  %s14 = inlined_call_operand.hbm [shape: f32[1,16], index: 14, kind: output, shape index: {}]
  %s15 = sld [smem:[#allocation0]]
  $region81: #{model_evolve_forward.1} parent=0
    _
  %s17 = ssub.s32 1, %s15
  %s18 = scalar_select 0, %s17, %s15
  %v19 = vstv %s13
  %20 = vst [vmem:[#allocation4] sm:$0x1] %v19
  $region1: #{model_evolve_forward.1} parent=0
    #allocation5 [shape = 'u8[8192]{0}', space=vmem, size = 0x2000, scoped, tag = 'input window, operand 6, single buffered']
    #allocation6 [shape = 's32[1]{0}', space=sflag, size = 0x4, scoped, tag = 'scoped memory for model_evolve_forward.1']
    #allocation7 [shape = 's32[1]{0}', space=sflag, size = 0x4, scoped, tag = 'scoped memory for model_evolve_forward.1']
    #allocation8 [shape = 's32[1]{0}', space=sflag, size = 0x4, scoped, tag = 'scoped memory for model_evolve_forward.1']
    #allocation9 [shape = 'u8[512]{0}', space=smem, size = 0x200, scoped, tag = 'input window, operand 8, single buffered']
    #allocation10 [shape = 'u8[512]{0}', space=vmem, size = 0x400, scoped, tag = 'output window, operand 0, single buffered']
    %21 = vsyncpa [#allocation6], 0
    %22 = vsyncpa [#allocation8], 0
    %23 = vsyncpa [#allocation7], 0
    // Predicated region
    $region2: #{model_evolve_forward.1} parent=1 // pred_check
      _
    $region3: #{model_evolve_forward.1} parent=1 // pred_check_branch
      %25 = sbr.rel (0) target = $region5
    $region4: #{model_evolve_forward.1} parent=1 // pred_region
      _
    $region5: #{model_evolve_forward.1} parent=1 // pred_fallthru
      _
    // Predicated region
    $region6: #{model_evolve_forward.1} parent=1 // pred_check
      _
    $region7: #{model_evolve_forward.1} parent=1 // pred_check_branch
      %27 = sbr.rel (0) target = $region9
    $region8: #{model_evolve_forward.1} parent=1 // pred_region
      _
    $region9: #{model_evolve_forward.1} parent=1 // pred_fallthru
      _
    // Predicated region
    $region10: #{model_evolve_forward.1} parent=1 // pred_check
      _
    $region11: #{model_evolve_forward.1} parent=1 // pred_check_branch
      %29 = sbr.rel (0) target = $region13
    $region12: #{model_evolve_forward.1} parent=1 // pred_region
      _
    $region13: #{model_evolve_forward.1} parent=1 // pred_fallthru
      _
    // Predicated region
    $region14: #{model_evolve_forward.1} parent=1 // pred_check
      _
    $region15: #{model_evolve_forward.1} parent=1 // pred_check_branch
      %31 = sbr.rel (0) target = $region17
    $region16: #{model_evolve_forward.1} parent=1 // pred_region
      _
    $region17: #{model_evolve_forward.1} parent=1 // pred_fallthru
      _
    // Predicated region
    $region18: #{model_evolve_forward.1} parent=1 // pred_check
      _
    $region19: #{model_evolve_forward.1} parent=1 // pred_check_branch
      %33 = sbr.rel (0) target = $region21
    $region20: #{model_evolve_forward.1} parent=1 // pred_region
      _
    $region21: #{model_evolve_forward.1} parent=1 // pred_fallthru
      _
    // Predicated region
    $region22: #{model_evolve_forward.1} parent=1 // pred_check
      _
    $region23: #{model_evolve_forward.1} parent=1 // pred_check_branch
      %35 = sbr.rel (0) target = $region25
    $region24: #{model_evolve_forward.1} parent=1 // pred_region
      _
    $region25: #{model_evolve_forward.1} parent=1 // pred_fallthru
      _
    // Predicated region
    $region26: #{model_evolve_forward.1} parent=1 // pred_check
      _
    $region27: #{model_evolve_forward.1} parent=1 // pred_check_branch
      %37 = sbr.rel (0) target = $region29
    $region28: #{model_evolve_forward.1} parent=1 // pred_region
      %s39 = ssub.s32 256, 256
      %40 = vsyncadd [#allocation6], %s39
      %s41 = sshll.u32 [#allocation5], 4
      %s42 = int_to_ptr.vmem [resolvable:$true] %s41
      %47 = dma.hbm_to_vmem [thread:$0]  %s6, 256, %s42, [#allocation6], 128, 128, 8
    $region29: #{model_evolve_forward.1} parent=1 // pred_fallthru
      _
    // Predicated region
    $region30: #{model_evolve_forward.1} parent=1 // pred_check
      _
    $region31: #{model_evolve_forward.1} parent=1 // pred_check_branch
      %49 = sbr.rel (0) target = $region33
    $region32: #{model_evolve_forward.1} parent=1 // pred_region
      _
    $region33: #{model_evolve_forward.1} parent=1 // pred_fallthru
      _
    // Predicated region
    $region34: #{model_evolve_forward.1} parent=1 // pred_check
      _
    $region35: #{model_evolve_forward.1} parent=1 // pred_check_branch
      %51 = sbr.rel (0) target = $region37
    $region36: #{model_evolve_forward.1} parent=1 // pred_region
      %s53 = ssub.s32 16, 16
      %54 = vsyncadd [#allocation8], %s53
      %s56 = sshll.u32 %s8, 4
      %s57 = int_to_ptr.vmem [resolvable:$true] %s56
      %59 = dma.vmem_to_smem %s57, 16, [#allocation9], [#allocation8]
    $region37: #{model_evolve_forward.1} parent=1 // pred_fallthru
      _
    // Predicated region
    $region38: #{model_evolve_forward.1} parent=1 // pred_check
      _
    $region39: #{model_evolve_forward.1} parent=1 // pred_check_branch
      %61 = sbr.rel (0) target = $region41
    $region40: #{model_evolve_forward.1} parent=1 // pred_region
      _
    $region41: #{model_evolve_forward.1} parent=1 // pred_fallthru
      _
    // Predicated region
    $region42: #{model_evolve_forward.1} parent=1 // pred_check
      _
    $region43: #{model_evolve_forward.1} parent=1 // pred_check_branch
      %63 = sbr.rel (0) target = $region45
    $region44: #{model_evolve_forward.1} parent=1 // pred_region
      _
    $region45: #{model_evolve_forward.1} parent=1 // pred_fallthru
      _
    // Predicated region
    $region46: #{model_evolve_forward.1} parent=1 // pred_check
      _
    $region47: #{model_evolve_forward.1} parent=1 // pred_check_branch
      %65 = sbr.rel (0) target = $region49
    $region48: #{model_evolve_forward.1} parent=1 // pred_region
      _
    $region49: #{model_evolve_forward.1} parent=1 // pred_fallthru
      _
    // Predicated region
    $region50: #{model_evolve_forward.1} parent=1 // pred_check
      _
    $region51: #{model_evolve_forward.1} parent=1 // pred_check_branch
      %67 = sbr.rel (0) target = $region53
    $region52: #{model_evolve_forward.1} parent=1 // pred_region
      _
    $region53: #{model_evolve_forward.1} parent=1 // pred_fallthru
      _
    // Predicated region
    $region54: #{model_evolve_forward.1} parent=1 // pred_check
      _
    $region55: #{model_evolve_forward.1} parent=1 // pred_check_branch
      %69 = sbr.rel (0) target = $region57
    $region56: #{model_evolve_forward.1} parent=1 // pred_region
      _
    $region57: #{model_evolve_forward.1} parent=1 // pred_fallthru
      _
    // Predicated region
    $region58: #{model_evolve_forward.1} parent=1 // pred_check
      _
    $region59: #{model_evolve_forward.1} parent=1 // pred_check_branch
      %71 = sbr.rel (0) target = $region61
    $region60: #{model_evolve_forward.1} parent=1 // pred_region
      %72 = dma.done [#allocation6], 256
    $region61: #{model_evolve_forward.1} parent=1 // pred_fallthru
      _
    // Predicated region
    $region62: #{model_evolve_forward.1} parent=1 // pred_check
      _
    $region63: #{model_evolve_forward.1} parent=1 // pred_check_branch
      %74 = sbr.rel (0) target = $region65
    $region64: #{model_evolve_forward.1} parent=1 // pred_region
      %75 = dma.done [#allocation8], 16
    $region65: #{model_evolve_forward.1} parent=1 // pred_fallthru
      _
    %76 = sfence
    %v77 = vld [vmem:[%s0] sm:$0xff]
    %v78 = vld [vmem:[%s1] sm:$0xff]
    %v79 = vld [vmem:[%s2] sm:$0xff]
    %v80 = vld [vmem:[%s4] sm:$0x1]
    %v82 = vlaneseq
    %v83 = vshrl.u32 %v82, 7
    %v84 = vsub.s32 0, %v83
    %v85 = vrot.slane %v80, %v84
    %vm87 = vcmask 64512
    %v89 = vsel %vm87, %v77, 0
    %91 = vmatprep.subr.mxu0 0.0
    %92 = vmatpush1.msra.mxu0 0.0
    %93 = vmatprep.subr.mxu0 0.0
    %94 = vmatpush1.msra.mxu0 0.0
    %95 = vmatprep.subr.mxu0 0.0
    %96 = vmatpush1.msra.mxu0 0.0
    %97 = vmatprep.subr.mxu0 0.0
    %98 = vmatpush1.msra.mxu0 0.0
    %99 = vmatprep.subr.mxu0 0.0
    %100 = vmatpush1.msra.mxu0 0.0
    %101 = vmatprep.subr.mxu0 0.0
    %102 = vmatpush1.msra.mxu0 0.0
    %103 = vmatprep.subr.mxu0 0.0
    %104 = vmatpush1.msra.mxu0 0.0
    %105 = vmatprep.subr.mxu0 0.0
    %106 = vmatpush1.msra.mxu0 0.0
    %107 = vmatprep.subr.mxu0 0.0
    %108 = vmatpush1.msra.mxu0 0.0
    %109 = vmatprep.subr.mxu0 0.0
    %110 = vmatpush1.msra.mxu0 0.0
    %111 = vmatprep.subr.mxu0 0.0
    %112 = vmatpush1.msra.mxu0 0.0
    %113 = vmatprep.subr.mxu0 0.0
    %114 = vmatpush1.msra.mxu0 0.0
    %115 = vmatprep.subr.mxu0 0.0
    %116 = vmatpush1.msra.mxu0 0.0
    %117 = vmatprep.subr.mxu0 0.0
    %118 = vmatpush1.msra.mxu0 0.0
    %119 = vmatprep.subr.mxu0 0.0
    %120 = vmatpush1.msra.mxu0 0.0
    %121 = vmatprep.subr.mxu0 0.0
    %122 = vmatpush1.msra.mxu0 %v79
    %123 = vmatprep.subr.mxu0 0.0
    %124 = vmatpush2.msra.mxu0 0.0
    %125 = vmatprep.subr.mxu0 0.0
    %126 = vmatpush2.msra.mxu0 0.0
    %127 = vmatprep.subr.mxu0 0.0
    %128 = vmatpush2.msra.mxu0 0.0
    %129 = vmatprep.subr.mxu0 0.0
    %130 = vmatpush2.msra.mxu0 0.0
    %131 = vmatprep.subr.mxu0 0.0
    %132 = vmatpush2.msra.mxu0 0.0
    %133 = vmatprep.subr.mxu0 0.0
    %134 = vmatpush2.msra.mxu0 0.0
    %135 = vmatprep.subr.mxu0 0.0
    %136 = vmatpush2.msra.mxu0 0.0
    %137 = vmatprep.subr.mxu0 0.0
    %138 = vmatpush2.msra.mxu0 0.0
    %139 = vmatprep.subr.mxu0 0.0
    %140 = vmatpush2.msra.mxu0 0.0
    %141 = vmatprep.subr.mxu0 0.0
    %142 = vmatpush2.msra.mxu0 0.0
    %143 = vmatprep.subr.mxu0 0.0
    %144 = vmatpush2.msra.mxu0 0.0
    %145 = vmatprep.subr.mxu0 0.0
    %146 = vmatpush2.msra.mxu0 0.0
    %147 = vmatprep.subr.mxu0 0.0
    %148 = vmatpush2.msra.mxu0 0.0
    %149 = vmatprep.subr.mxu0 0.0
    %150 = vmatpush2.msra.mxu0 0.0
    %151 = vmatprep.subr.mxu0 0.0
    %152 = vmatpush2.msra.mxu0 0.0
    %153 = vmatprep.subr.mxu0 0.0
    %154 = vmatpush2.msra.mxu0 0.0
    %155 = vmatprep.mubr.f32.mxu0 0.0
    %156 = vmatmul.mubr.f32.gmra.mxu0 %v89
    %v157 = vpop.f32.mrf.mxu0
    %v158 = vadd.f32 %v85, %v157
    %v159 = vpop.f32.mrf.mxu0
    %160 = vdwg.mxu0
    %v161 = vld [vmem:[%s3] sm:$0xff]
    %v162 = vld [vmem:[%s5] sm:$0x1]
    %v164 = vlaneseq
    %v165 = vshrl.u32 %v164, 7
    %v166 = vsub.s32 0, %v165
    %v167 = vrot.slane %v162, %v166
    %v170 = vsel %vm87, %v78, 0
    %172 = vmatprep.subr.mxu0 0.0
    %173 = vmatpush1.msra.mxu0 0.0
    %174 = vmatprep.subr.mxu0 0.0
    %175 = vmatpush1.msra.mxu0 0.0
    %176 = vmatprep.subr.mxu0 0.0
    %177 = vmatpush1.msra.mxu0 0.0
    %178 = vmatprep.subr.mxu0 0.0
    %179 = vmatpush1.msra.mxu0 0.0
    %180 = vmatprep.subr.mxu0 0.0
    %181 = vmatpush1.msra.mxu0 0.0
    %182 = vmatprep.subr.mxu0 0.0
    %183 = vmatpush1.msra.mxu0 0.0
    %184 = vmatprep.subr.mxu0 0.0
    %185 = vmatpush1.msra.mxu0 0.0
    %186 = vmatprep.subr.mxu0 0.0
    %187 = vmatpush1.msra.mxu0 0.0
    %188 = vmatprep.subr.mxu0 0.0
    %189 = vmatpush1.msra.mxu0 0.0
    %190 = vmatprep.subr.mxu0 0.0
    %191 = vmatpush1.msra.mxu0 0.0
    %192 = vmatprep.subr.mxu0 0.0
    %193 = vmatpush1.msra.mxu0 0.0
    %194 = vmatprep.subr.mxu0 0.0
    %195 = vmatpush1.msra.mxu0 0.0
    %196 = vmatprep.subr.mxu0 0.0
    %197 = vmatpush1.msra.mxu0 0.0
    %198 = vmatprep.subr.mxu0 0.0
    %199 = vmatpush1.msra.mxu0 0.0
    %200 = vmatprep.subr.mxu0 0.0
    %201 = vmatpush1.msra.mxu0 0.0
    %202 = vmatprep.subr.mxu0 0.0
    %203 = vmatpush1.msra.mxu0 %v161
    %204 = vmatprep.subr.mxu0 0.0
    %205 = vmatpush2.msra.mxu0 0.0
    %206 = vmatprep.subr.mxu0 0.0
    %207 = vmatpush2.msra.mxu0 0.0
    %208 = vmatprep.subr.mxu0 0.0
    %209 = vmatpush2.msra.mxu0 0.0
    %210 = vmatprep.subr.mxu0 0.0
    %211 = vmatpush2.msra.mxu0 0.0
    %212 = vmatprep.subr.mxu0 0.0
    %213 = vmatpush2.msra.mxu0 0.0
    %214 = vmatprep.subr.mxu0 0.0
    %215 = vmatpush2.msra.mxu0 0.0
    %216 = vmatprep.subr.mxu0 0.0
    %217 = vmatpush2.msra.mxu0 0.0
    %218 = vmatprep.subr.mxu0 0.0
    %219 = vmatpush2.msra.mxu0 0.0
    %220 = vmatprep.subr.mxu0 0.0
    %221 = vmatpush2.msra.mxu0 0.0
    %222 = vmatprep.subr.mxu0 0.0
    %223 = vmatpush2.msra.mxu0 0.0
    %224 = vmatprep.subr.mxu0 0.0
    %225 = vmatpush2.msra.mxu0 0.0
    %226 = vmatprep.subr.mxu0 0.0
    %227 = vmatpush2.msra.mxu0 0.0
    %228 = vmatprep.subr.mxu0 0.0
    %229 = vmatpush2.msra.mxu0 0.0
    %230 = vmatprep.subr.mxu0 0.0
    %231 = vmatpush2.msra.mxu0 0.0
    %232 = vmatprep.subr.mxu0 0.0
    %233 = vmatpush2.msra.mxu0 0.0
    %234 = vmatprep.subr.mxu0 0.0
    %235 = vmatpush2.msra.mxu0 0.0
    %236 = vmatprep.mubr.f32.mxu0 0.0
    %237 = vmatmul.mubr.f32.gmra.mxu0 %v170
    %v238 = vpop.f32.mrf.mxu0
    %v239 = vadd.f32 %v167, %v238
    %v240 = vpop.f32.mrf.mxu0
    %241 = vdwg.mxu0
    %v242 = vadd.f32 %v158, %v239
    %v243 = vxor.u32 %v242, 2147483648
    %v244 = vmul.f32 %v243, 1.442695
    %v245 = vpow.pop %v244
    %v246 = vadd.f32 %v245, 1.0
    %v247 = vrcp.pop %v246
    %v248 = vmul.f32 1.0, %v247
    %250 = vrot.lane.b32.xlu0 %v239, 112
    %v251 = vpop.permute.xlu0 %250
    %v253 = vmul.f32 %v248, %v251
    %255 = vrot.lane.b32.xlu0 %v253, 16
    %v256 = vpop.permute.xlu0 %255
    %v258 = vadd.f32 %v158, %v256
    %v259 = vtanh.pop %v258
    %v260 = vsub.f32 1.0, %v248
    %262 = vrot.lane.b32.xlu0 %v259, 120
    %v263 = vpop.permute.xlu0 %262
    %v265 = vmul.f32 %v260, %v263
    %266 = vrot.lane.b32.xlu0 %v78, 8
    %v267 = vpop.permute.xlu0 %266
    %v269 = vmul.f32 %v248, %v267
    %v270 = vadd.f32 %v265, %v269
    %v271 = vld [vmem:[%s7] sm:$0xff]
    %v272 = vld [vmem:[%s7 + $0x8] sm:$0xff]
    %274 = vrot.lane.b32.xlu0 %v270, 120
    %v275 = vpop.permute.xlu0 %274
    %v278 = vsel %vm87, %v271, 0
    %v281 = vsel %vm87, %v272, 0
    %283 = vmatprep.subr.mxu0 0.0
    %284 = vmatpush1.msra.mxu0 0.0
    %285 = vmatprep.subr.mxu0 0.0
    %286 = vmatpush1.msra.mxu0 0.0
    %287 = vmatprep.subr.mxu0 0.0
    %288 = vmatpush1.msra.mxu0 0.0
    %289 = vmatprep.subr.mxu0 0.0
    %290 = vmatpush1.msra.mxu0 0.0
    %291 = vmatprep.subr.mxu0 0.0
    %292 = vmatpush1.msra.mxu0 0.0
    %293 = vmatprep.subr.mxu0 0.0
    %294 = vmatpush1.msra.mxu0 0.0
    %295 = vmatprep.subr.mxu0 0.0
    %296 = vmatpush1.msra.mxu0 0.0
    %297 = vmatprep.subr.mxu0 0.0
    %298 = vmatpush1.msra.mxu0 0.0
    %299 = vmatprep.subr.mxu0 0.0
    %300 = vmatpush1.msra.mxu0 0.0
    %301 = vmatprep.subr.mxu0 0.0
    %302 = vmatpush1.msra.mxu0 0.0
    %303 = vmatprep.subr.mxu0 0.0
    %304 = vmatpush1.msra.mxu0 0.0
    %305 = vmatprep.subr.mxu0 0.0
    %306 = vmatpush1.msra.mxu0 0.0
    %307 = vmatprep.subr.mxu0 0.0
    %308 = vmatpush1.msra.mxu0 0.0
    %309 = vmatprep.subr.mxu0 0.0
    %310 = vmatpush1.msra.mxu0 0.0
    %311 = vmatprep.subr.mxu0 0.0
    %312 = vmatpush1.msra.mxu0 0.0
    %313 = vmatprep.subr.mxu0 0.0
    %314 = vmatpush1.msra.mxu0 %v275
    %315 = vmatprep.subr.mxu0 0.0
    %316 = vmatpush2.msra.mxu0 0.0
    %317 = vmatprep.subr.mxu0 0.0
    %318 = vmatpush2.msra.mxu0 0.0
    %319 = vmatprep.subr.mxu0 0.0
    %320 = vmatpush2.msra.mxu0 0.0
    %321 = vmatprep.subr.mxu0 0.0
    %322 = vmatpush2.msra.mxu0 0.0
    %323 = vmatprep.subr.mxu0 0.0
    %324 = vmatpush2.msra.mxu0 0.0
    %325 = vmatprep.subr.mxu0 0.0
    %326 = vmatpush2.msra.mxu0 0.0
    %327 = vmatprep.subr.mxu0 0.0
    %328 = vmatpush2.msra.mxu0 0.0
    %329 = vmatprep.subr.mxu0 0.0
    %330 = vmatpush2.msra.mxu0 0.0
    %331 = vmatprep.subr.mxu0 0.0
    %332 = vmatpush2.msra.mxu0 0.0
    %333 = vmatprep.subr.mxu0 0.0
    %334 = vmatpush2.msra.mxu0 0.0
    %335 = vmatprep.subr.mxu0 0.0
    %336 = vmatpush2.msra.mxu0 0.0
    %337 = vmatprep.subr.mxu0 0.0
    %338 = vmatpush2.msra.mxu0 0.0
    %339 = vmatprep.subr.mxu0 0.0
    %340 = vmatpush2.msra.mxu0 0.0
    %341 = vmatprep.subr.mxu0 0.0
    %342 = vmatpush2.msra.mxu0 0.0
    %343 = vmatprep.subr.mxu0 0.0
    %344 = vmatpush2.msra.mxu0 0.0
    %345 = vmatprep.subr.mxu0 0.0
    %346 = vmatpush2.msra.mxu0 0.0
    %347 = vmatprep.mubr.f32.mxu0 0.0
    %348 = vmatmul.mubr.f32.gmra.mxu0 %v278
    %v349 = vpop.f32.mrf.mxu0
    %v350 = vadd.f32 0.0, %v349
    %v351 = vpop.f32.mrf.mxu0
    %352 = vmatprep.mubr.f32.mxu0 0.0
    %353 = vmatmul.mubr.f32.gmra.mxu0 %v281
    %v354 = vpop.f32.mrf.mxu0
    %v355 = vadd.f32 0.0, %v354
    %v356 = vpop.f32.mrf.mxu0
    %357 = vdwg.mxu0
    %v358 = vld [vmem:[#allocation5] sm:$0xff]
    %v359 = vld [vmem:[#allocation5 + $0x8] sm:$0xff]
    %vm360 = vcmask 130048
    %v362 = vsel %vm360, %v358, 0
    %v365 = vsel %vm360, %v359, 0
    %367 = vmatprep.subr.mxu0 0.0
    %368 = vmatpush1.msra.mxu0 0.0
    %369 = vmatprep.subr.mxu0 0.0
    %370 = vmatpush1.msra.mxu0 0.0
    %371 = vmatprep.subr.mxu0 0.0
    %372 = vmatpush1.msra.mxu0 0.0
    %373 = vmatprep.subr.mxu0 0.0
    %374 = vmatpush1.msra.mxu0 0.0
    %375 = vmatprep.subr.mxu0 0.0
    %376 = vmatpush1.msra.mxu0 0.0
    %377 = vmatprep.subr.mxu0 0.0
    %378 = vmatpush1.msra.mxu0 0.0
    %379 = vmatprep.subr.mxu0 0.0
    %380 = vmatpush1.msra.mxu0 0.0
    %381 = vmatprep.subr.mxu0 0.0
    %382 = vmatpush1.msra.mxu0 0.0
    %383 = vmatprep.subr.mxu0 0.0
    %384 = vmatpush1.msra.mxu0 0.0
    %385 = vmatprep.subr.mxu0 0.0
    %386 = vmatpush1.msra.mxu0 0.0
    %387 = vmatprep.subr.mxu0 0.0
    %388 = vmatpush1.msra.mxu0 0.0
    %389 = vmatprep.subr.mxu0 0.0
    %390 = vmatpush1.msra.mxu0 0.0
    %391 = vmatprep.subr.mxu0 0.0
    %392 = vmatpush1.msra.mxu0 0.0
    %393 = vmatprep.subr.mxu0 0.0
    %394 = vmatpush1.msra.mxu0 0.0
    %395 = vmatprep.subr.mxu0 0.0
    %396 = vmatpush1.msra.mxu0 %v355
    %397 = vmatprep.subr.mxu0 0.0
    %398 = vmatpush1.msra.mxu0 %v350
    %399 = vmatprep.subr.mxu0 0.0
    %400 = vmatpush2.msra.mxu0 0.0
    %401 = vmatprep.subr.mxu0 0.0
    %402 = vmatpush2.msra.mxu0 0.0
    %403 = vmatprep.subr.mxu0 0.0
    %404 = vmatpush2.msra.mxu0 0.0
    %405 = vmatprep.subr.mxu0 0.0
    %406 = vmatpush2.msra.mxu0 0.0
    %407 = vmatprep.subr.mxu0 0.0
    %408 = vmatpush2.msra.mxu0 0.0
    %409 = vmatprep.subr.mxu0 0.0
    %410 = vmatpush2.msra.mxu0 0.0
    %411 = vmatprep.subr.mxu0 0.0
    %412 = vmatpush2.msra.mxu0 0.0
    %413 = vmatprep.subr.mxu0 0.0
    %414 = vmatpush2.msra.mxu0 0.0
    %415 = vmatprep.subr.mxu0 0.0
    %416 = vmatpush2.msra.mxu0 0.0
    %417 = vmatprep.subr.mxu0 0.0
    %418 = vmatpush2.msra.mxu0 0.0
    %419 = vmatprep.subr.mxu0 0.0
    %420 = vmatpush2.msra.mxu0 0.0
    %421 = vmatprep.subr.mxu0 0.0
    %422 = vmatpush2.msra.mxu0 0.0
    %423 = vmatprep.subr.mxu0 0.0
    %424 = vmatpush2.msra.mxu0 0.0
    %425 = vmatprep.subr.mxu0 0.0
    %426 = vmatpush2.msra.mxu0 0.0
    %427 = vmatprep.subr.mxu0 0.0
    %428 = vmatpush2.msra.mxu0 0.0
    %429 = vmatprep.subr.mxu0 0.0
    %430 = vmatpush2.msra.mxu0 0.0
    %431 = vmatprep.mubr.f32.mxu0 0.0
    %432 = vmatmul.mubr.f32.gmra.mxu0 %v362
    %v433 = vpop.f32.mrf.mxu0
    %v434 = vadd.f32 0.0, %v433
    %v435 = vpop.f32.mrf.mxu0
    %436 = vmatprep.mubr.f32.mxu0 0.0
    %437 = vmatmul.mubr.f32.gmra.mxu0 %v365
    %v438 = vpop.f32.mrf.mxu0
    %v439 = vadd.f32 0.0, %v438
    %v440 = vpop.f32.mrf.mxu0
    %441 = vdwg.mxu0
    %442 = vst.msk [vmem:[#allocation2] sm:$0xff] %vm87, %v434
    %443 = vst.msk [vmem:[#allocation2 + $0x8] sm:$0xff] %vm87, %v439
    loop: start=0, step=1, limit=32
    $region66: #{model_evolve_forward.1} parent=1 // loop_pre_header
      _
    $region67: #{model_evolve_forward.1} parent=1 // loop_header
      %s445 = sphi 0, %s449
      %p446 = scmp.ge.s32.totalorder %s445, 32
    $region68: #{model_evolve_forward.1} parent=1 // loop_header_branch
      %448 = sbr.rel (%p446) target = $region72
    $region69: #{model_evolve_forward.1} parent=1 // loop_body
      %s450 = sld [smem:[#allocation9 + %s445]]
      %s451 = scalar_lea.vmem [#allocation2], %s450
      %v452 = vld [vmem:[%s451] sm:$0x1]
      %s453 = scalar_lea.vmem [#allocation3], %s445
      %vm454 = vcmask 57344
      %455 = vst.msk [vmem:[%s453] sm:$0x1] %vm454, %v452
    $region70: #{model_evolve_forward.1} parent=1 // loop_footer
      %s449 = sadd.s32 1, %s445
    $region71: #{model_evolve_forward.1} parent=1 // loop_footer_branch
      %444 = sbr.rel target = $region67
    $region72: #{model_evolve_forward.1} parent=1 // loop_exit
      _
    %v456 = vld [vmem:[#allocation3] sm:$0xff]
    %v457 = vld [vmem:[#allocation3 + $0x8] sm:$0xff]
    %v458 = vld [vmem:[#allocation3 + $0x10] sm:$0xff]
    %v459 = vld [vmem:[#allocation3 + $0x18] sm:$0xff]
    %v460 = vld [vmem:[%s9] sm:$0xff]
    %v461 = vld [vmem:[%s10] sm:$0xff]
    %v463 = vsel %vm87, %v458, 0
    %v466 = vsel %vm87, %v459, 0
    %468 = vmatprep.subr.mxu0 0.0
    %469 = vmatpush1.msra.mxu0 0.0
    %470 = vmatprep.subr.mxu0 0.0
    %471 = vmatpush1.msra.mxu0 0.0
    %472 = vmatprep.subr.mxu0 0.0
    %473 = vmatpush1.msra.mxu0 0.0
    %474 = vmatprep.subr.mxu0 0.0
    %475 = vmatpush1.msra.mxu0 0.0
    %476 = vmatprep.subr.mxu0 0.0
    %477 = vmatpush1.msra.mxu0 0.0
    %478 = vmatprep.subr.mxu0 0.0
    %479 = vmatpush1.msra.mxu0 0.0
    %480 = vmatprep.subr.mxu0 0.0
    %481 = vmatpush1.msra.mxu0 0.0
    %482 = vmatprep.subr.mxu0 0.0
    %483 = vmatpush1.msra.mxu0 0.0
    %484 = vmatprep.subr.mxu0 0.0
    %485 = vmatpush1.msra.mxu0 0.0
    %486 = vmatprep.subr.mxu0 0.0
    %487 = vmatpush1.msra.mxu0 0.0
    %488 = vmatprep.subr.mxu0 0.0
    %489 = vmatpush1.msra.mxu0 0.0
    %490 = vmatprep.subr.mxu0 0.0
    %491 = vmatpush1.msra.mxu0 0.0
    %492 = vmatprep.subr.mxu0 0.0
    %493 = vmatpush1.msra.mxu0 0.0
    %494 = vmatprep.subr.mxu0 0.0
    %495 = vmatpush1.msra.mxu0 0.0
    %496 = vmatprep.subr.mxu0 0.0
    %497 = vmatpush1.msra.mxu0 0.0
    %498 = vmatprep.subr.mxu0 0.0
    %499 = vmatpush1.msra.mxu0 %v461
    %500 = vmatprep.subr.mxu0 0.0
    %501 = vmatpush2.msra.mxu0 0.0
    %502 = vmatprep.subr.mxu0 0.0
    %503 = vmatpush2.msra.mxu0 0.0
    %504 = vmatprep.subr.mxu0 0.0
    %505 = vmatpush2.msra.mxu0 0.0
    %506 = vmatprep.subr.mxu0 0.0
    %507 = vmatpush2.msra.mxu0 0.0
    %508 = vmatprep.subr.mxu0 0.0
    %509 = vmatpush2.msra.mxu0 0.0
    %510 = vmatprep.subr.mxu0 0.0
    %511 = vmatpush2.msra.mxu0 0.0
    %512 = vmatprep.subr.mxu0 0.0
    %513 = vmatpush2.msra.mxu0 0.0
    %514 = vmatprep.subr.mxu0 0.0
    %515 = vmatpush2.msra.mxu0 0.0
    %516 = vmatprep.subr.mxu0 0.0
    %517 = vmatpush2.msra.mxu0 0.0
    %518 = vmatprep.subr.mxu0 0.0
    %519 = vmatpush2.msra.mxu0 0.0
    %520 = vmatprep.subr.mxu0 0.0
    %521 = vmatpush2.msra.mxu0 0.0
    %522 = vmatprep.subr.mxu0 0.0
    %523 = vmatpush2.msra.mxu0 0.0
    %524 = vmatprep.subr.mxu0 0.0
    %525 = vmatpush2.msra.mxu0 0.0
    %526 = vmatprep.subr.mxu0 0.0
    %527 = vmatpush2.msra.mxu0 0.0
    %528 = vmatprep.subr.mxu0 0.0
    %529 = vmatpush2.msra.mxu0 0.0
    %530 = vmatprep.subr.mxu0 0.0
    %531 = vmatpush2.msra.mxu0 0.0
    %532 = vmatprep.mubr.f32.mxu0 0.0
    %533 = vmatmul.mubr.f32.gmra.mxu0 %v463
    %v534 = vpop.f32.mrf.mxu0
    %v535 = vadd.f32 0.0, %v534
    %v536 = vpop.f32.mrf.mxu0
    %537 = vmatprep.mubr.f32.mxu0 0.0
    %538 = vmatmul.mubr.f32.gmra.mxu0 %v466
    %v539 = vpop.f32.mrf.mxu0
    %v540 = vadd.f32 0.0, %v539
    %v541 = vpop.f32.mrf.mxu0
    %542 = vdwg.mxu0
    %v544 = vsel %vm87, %v456, 0
    %v547 = vsel %vm87, %v457, 0
    %549 = vmatprep.subr.mxu0 0.0
    %550 = vmatpush1.msra.mxu0 0.0
    %551 = vmatprep.subr.mxu0 0.0
    %552 = vmatpush1.msra.mxu0 0.0
    %553 = vmatprep.subr.mxu0 0.0
    %554 = vmatpush1.msra.mxu0 0.0
    %555 = vmatprep.subr.mxu0 0.0
    %556 = vmatpush1.msra.mxu0 0.0
    %557 = vmatprep.subr.mxu0 0.0
    %558 = vmatpush1.msra.mxu0 0.0
    %559 = vmatprep.subr.mxu0 0.0
    %560 = vmatpush1.msra.mxu0 0.0
    %561 = vmatprep.subr.mxu0 0.0
    %562 = vmatpush1.msra.mxu0 0.0
    %563 = vmatprep.subr.mxu0 0.0
    %564 = vmatpush1.msra.mxu0 0.0
    %565 = vmatprep.subr.mxu0 0.0
    %566 = vmatpush1.msra.mxu0 0.0
    %567 = vmatprep.subr.mxu0 0.0
    %568 = vmatpush1.msra.mxu0 0.0
    %569 = vmatprep.subr.mxu0 0.0
    %570 = vmatpush1.msra.mxu0 0.0
    %571 = vmatprep.subr.mxu0 0.0
    %572 = vmatpush1.msra.mxu0 0.0
    %573 = vmatprep.subr.mxu0 0.0
    %574 = vmatpush1.msra.mxu0 0.0
    %575 = vmatprep.subr.mxu0 0.0
    %576 = vmatpush1.msra.mxu0 0.0
    %577 = vmatprep.subr.mxu0 0.0
    %578 = vmatpush1.msra.mxu0 0.0
    %579 = vmatprep.subr.mxu0 0.0
    %580 = vmatpush1.msra.mxu0 %v460
    %581 = vmatprep.subr.mxu0 0.0
    %582 = vmatpush2.msra.mxu0 0.0
    %583 = vmatprep.subr.mxu0 0.0
    %584 = vmatpush2.msra.mxu0 0.0
    %585 = vmatprep.subr.mxu0 0.0
    %586 = vmatpush2.msra.mxu0 0.0
    %587 = vmatprep.subr.mxu0 0.0
    %588 = vmatpush2.msra.mxu0 0.0
    %589 = vmatprep.subr.mxu0 0.0
    %590 = vmatpush2.msra.mxu0 0.0
    %591 = vmatprep.subr.mxu0 0.0
    %592 = vmatpush2.msra.mxu0 0.0
    %593 = vmatprep.subr.mxu0 0.0
    %594 = vmatpush2.msra.mxu0 0.0
    %595 = vmatprep.subr.mxu0 0.0
    %596 = vmatpush2.msra.mxu0 0.0
    %597 = vmatprep.subr.mxu0 0.0
    %598 = vmatpush2.msra.mxu0 0.0
    %599 = vmatprep.subr.mxu0 0.0
    %600 = vmatpush2.msra.mxu0 0.0
    %601 = vmatprep.subr.mxu0 0.0
    %602 = vmatpush2.msra.mxu0 0.0
    %603 = vmatprep.subr.mxu0 0.0
    %604 = vmatpush2.msra.mxu0 0.0
    %605 = vmatprep.subr.mxu0 0.0
    %606 = vmatpush2.msra.mxu0 0.0
    %607 = vmatprep.subr.mxu0 0.0
    %608 = vmatpush2.msra.mxu0 0.0
    %609 = vmatprep.subr.mxu0 0.0
    %610 = vmatpush2.msra.mxu0 0.0
    %611 = vmatprep.subr.mxu0 0.0
    %612 = vmatpush2.msra.mxu0 0.0
    %613 = vmatprep.mubr.f32.mxu0 0.0
    %614 = vmatmul.mubr.f32.gmra.mxu0 %v544
    %v615 = vpop.f32.mrf.mxu0
    %v616 = vadd.f32 %v535, %v615
    %v617 = vpop.f32.mrf.mxu0
    %618 = vmatprep.mubr.f32.mxu0 0.0
    %619 = vmatmul.mubr.f32.gmra.mxu0 %v547
    %v620 = vpop.f32.mrf.mxu0
    %v621 = vadd.f32 %v540, %v620
    %v622 = vpop.f32.mrf.mxu0
    %623 = vdwg.mxu0
    %v624 = vld [vmem:[%s11] sm:$0x1]
    %v626 = vlaneseq
    %v627 = vshrl.u32 %v626, 7
    %v628 = vsub.s32 0, %v627
    %v629 = vrot.slane %v624, %v628
    %v631 = vadd.f32 %v616, %v629
    %v632 = vadd.f32 %v621, %v629
    %v633 = vmax.f32 %v631, 0.0
    %v634 = vmax.f32 %v632, 0.0
    %v635 = vld [vmem:[%s12] sm:$0x1]
    %v636 = vld [vmem:[#allocation4] sm:$0x1]
    %638 = vset.pattern.permute.xlu0 0
    %639 = vperm.xlu0 %638, %v636
    %v640 = vpop.permute.xlu0 %639
    %v642 = vlaneseq
    %v643 = vshrl.u32 %v642, 7
    %v644 = vsub.s32 0, %v643
    %v645 = vrot.slane %v640, %v644
    %v647 = vsel %vm87, %v635, 0
    %v650 = vsel %vm87, %v633, 0
    %v653 = vsel %vm87, %v634, 0
    %655 = vmatprep.subr.mxu0 0.0
    %656 = vmatpush1.xpose.msra.mxu0 0.0
    %657 = vmatprep.subr.mxu0 0.0
    %658 = vmatpush1.xpose.msra.mxu0 0.0
    %659 = vmatprep.subr.mxu0 0.0
    %660 = vmatpush1.xpose.msra.mxu0 0.0
    %661 = vmatprep.subr.mxu0 0.0
    %662 = vmatpush1.xpose.msra.mxu0 0.0
    %663 = vmatprep.subr.mxu0 0.0
    %664 = vmatpush1.xpose.msra.mxu0 0.0
    %665 = vmatprep.subr.mxu0 0.0
    %666 = vmatpush1.xpose.msra.mxu0 0.0
    %667 = vmatprep.subr.mxu0 0.0
    %668 = vmatpush1.xpose.msra.mxu0 0.0
    %669 = vmatprep.subr.mxu0 0.0
    %670 = vmatpush1.xpose.msra.mxu0 0.0
    %671 = vmatprep.subr.mxu0 0.0
    %672 = vmatpush1.xpose.msra.mxu0 0.0
    %673 = vmatprep.subr.mxu0 0.0
    %674 = vmatpush1.xpose.msra.mxu0 0.0
    %675 = vmatprep.subr.mxu0 0.0
    %676 = vmatpush1.xpose.msra.mxu0 0.0
    %677 = vmatprep.subr.mxu0 0.0
    %678 = vmatpush1.xpose.msra.mxu0 0.0
    %679 = vmatprep.subr.mxu0 0.0
    %680 = vmatpush1.xpose.msra.mxu0 0.0
    %681 = vmatprep.subr.mxu0 0.0
    %682 = vmatpush1.xpose.msra.mxu0 0.0
    %683 = vmatprep.subr.mxu0 0.0
    %684 = vmatpush1.xpose.msra.mxu0 %v653
    %685 = vmatprep.subr.mxu0 0.0
    %686 = vmatpush1.xpose.msra.mxu0 %v650
    %687 = vmatprep.subr.mxu0 0.0
    %688 = vmatpush2.xpose.msra.mxu0 0.0
    %689 = vmatprep.subr.mxu0 0.0
    %690 = vmatpush2.xpose.msra.mxu0 0.0
    %691 = vmatprep.subr.mxu0 0.0
    %692 = vmatpush2.xpose.msra.mxu0 0.0
    %693 = vmatprep.subr.mxu0 0.0
    %694 = vmatpush2.xpose.msra.mxu0 0.0
    %695 = vmatprep.subr.mxu0 0.0
    %696 = vmatpush2.xpose.msra.mxu0 0.0
    %697 = vmatprep.subr.mxu0 0.0
    %698 = vmatpush2.xpose.msra.mxu0 0.0
    %699 = vmatprep.subr.mxu0 0.0
    %700 = vmatpush2.xpose.msra.mxu0 0.0
    %701 = vmatprep.subr.mxu0 0.0
    %702 = vmatpush2.xpose.msra.mxu0 0.0
    %703 = vmatprep.subr.mxu0 0.0
    %704 = vmatpush2.xpose.msra.mxu0 0.0
    %705 = vmatprep.subr.mxu0 0.0
    %706 = vmatpush2.xpose.msra.mxu0 0.0
    %707 = vmatprep.subr.mxu0 0.0
    %708 = vmatpush2.xpose.msra.mxu0 0.0
    %709 = vmatprep.subr.mxu0 0.0
    %710 = vmatpush2.xpose.msra.mxu0 0.0
    %711 = vmatprep.subr.mxu0 0.0
    %712 = vmatpush2.xpose.msra.mxu0 0.0
    %713 = vmatprep.subr.mxu0 0.0
    %714 = vmatpush2.xpose.msra.mxu0 0.0
    %715 = vmatprep.subr.mxu0 0.0
    %716 = vmatpush2.xpose.msra.mxu0 0.0
    %717 = vmatprep.subr.mxu0 0.0
    %718 = vmatpush2.xpose.msra.mxu0 0.0
    %719 = vmatprep.mubr.f32.mxu0 0.0
    %720 = vmatmul.mubr.f32.gmra.mxu0 %v647
    %v721 = vpop.f32.mrf.mxu0
    %v722 = vadd.f32 %v645, %v721
    %v723 = vpop.f32.mrf.mxu0
    %724 = vdwg.mxu0
    %vm725 = vcmask 122880
    %726 = vst.msk [vmem:[#allocation10] sm:$0x1] %vm725, %v722
    // Predicated region
    $region73: #{model_evolve_forward.1} parent=1 // pred_check
      _
    $region74: #{model_evolve_forward.1} parent=1 // pred_check_branch
      %728 = sbr.rel (0) target = $region76
    $region75: #{model_evolve_forward.1} parent=1 // pred_region
      %s730 = ssub.s32 16, 16
      %731 = vsyncadd [#allocation7], %s730
      %s733 = sshll.u32 [#allocation10], 4
      %s734 = int_to_ptr.vmem [resolvable:$true] %s733
      %736 = dma.vmem_to_hbm [thread:$0]  %s734, 16, %s14, [#allocation7]
    $region76: #{model_evolve_forward.1} parent=1 // pred_fallthru
      _
    // Predicated region
    $region77: #{model_evolve_forward.1} parent=1 // pred_check
      _
    $region78: #{model_evolve_forward.1} parent=1 // pred_check_branch
      %738 = sbr.rel (0) target = $region80
    $region79: #{model_evolve_forward.1} parent=1 // pred_region
      %739 = dma.done [#allocation7], 16
    $region80: #{model_evolve_forward.1} parent=1 // pred_fallthru
      _
    %740 = vsyncpa [#allocation6], 1
    %741 = vsyncpa [#allocation7], 1
    %742 = vsyncpa [#allocation8], 1

</llo_original>
